<compile_context>
chip_gen: v5e
topology: v5e:2x2
jax: 0.10.0
libtpu: 0.0.40
codegen_flags: <defaults>
</compile_context>

<pallas_src>
import functools

import jax
import jax.numpy as jnp
import numpy as np
from jax.experimental import pallas as pl
from jax.experimental.pallas import tpu as pltpu

_LANE = 128
_DEFAULT_VMEM_CAP = 64 << 20  # conservative fallback = v7x per-TC VMEM


def _vmem_capacity_bytes():
    """Physical VMEM per TensorCore; falls back to the v7x value (smallest)."""
    try:
        return int(pltpu.get_tpu_info().vmem_capacity_bytes)
    except Exception:  # non-TPU backend / old runtime
        return _DEFAULT_VMEM_CAP


def _pick_tile(total, align, max_size):
    """Largest divisor of `total` that is a multiple of `align` and <= max_size.

    Falls back to `total` itself (a full-extent block dim is always legal)."""
    best = 0
    d = align
    limit = min(total, max_size)
    while d <= limit:
        if total % d == 0:
            best = d
        d += align
    return best if best > 0 else total


def _stats_kernel(x_ref, w_ref, b_ref, scale_ref, shift_ref,
                  acc_sum_ref, acc_sq_ref, *, inv_count, eps):
    """Accumulate per-channel sum/sumsq over the (N, HW) reduction axes, then
    fold with weight/bias into per-channel scale/shift on the last step."""
    ni = pl.program_id(1)
    hi = pl.program_id(2)

    @pl.when((ni == 0) & (hi == 0))
    def _init():
        acc_sum_ref[...] = jnp.zeros_like(acc_sum_ref)
        acc_sq_ref[...] = jnp.zeros_like(acc_sq_ref)

    x = x_ref[...].astype(jnp.float32)                       # (Ct, HWt)
    # Lane-axis reductions (XLU slot) — free under an HBM-bound kernel.
    acc_sum_ref[...] += jnp.sum(x, axis=-1, keepdims=True)
    acc_sq_ref[...] += jnp.sum(x * x, axis=-1, keepdims=True)

    @pl.when((ni == pl.num_programs(1) - 1) & (hi == pl.num_programs(2) - 1))
    def _finalize():
        mean = acc_sum_ref[...] * inv_count                  # (Ct, 1)
        # E[x^2] - E[x]^2 (biased); clamp guards f32 cancellation for
        # mean >> std data (same formula as the reference below).
        var = acc_sq_ref[...] * inv_count - mean * mean
        var = jnp.maximum(var, 0.0)
        inv_std = jax.lax.rsqrt(var + eps)
        scale = w_ref[...] * inv_std
        scale_ref[...] = scale
        shift_ref[...] = b_ref[...] - mean * scale


def _apply_kernel(x_ref, scale_ref, shift_ref, o_ref, *, slope):
    """y = x * scale + shift, then leaky_relu via max (0 < slope < 1)."""
    x = x_ref[...].astype(jnp.float32)
    y = x * scale_ref[...] + shift_ref[...]                  # (Ct,1) broadcasts
    o_ref[...] = jnp.maximum(y, slope * y).astype(o_ref.dtype)


def inplace_abn_sync(x_nchw, weight, bias, *, eps=1e-5, slope=0.01,
                     in_place=True):
    """x_nchw: (N, C, H, W). weight/bias: (C,). Returns (N, C, H, W)."""
    n, c, h, w = x_nchw.shape
    hw = h * w
    itemsize = jnp.dtype(x_nchw.dtype).itemsize

    # Free view for a contiguous NCHW tensor (no host-side transposes).
    x = x_nchw.reshape(n, c, hw)

    # Pad HW to a lane multiple so every block is lane-dense in pass 2.
    # Zero padding does not perturb the stats (we divide by the real count).
    # TODO(synk): for very large misaligned HW the pad + final slice costs ~2
    #             extra HBM passes; a masked-remainder grid step would avoid it.
    hw_pad = ((hw + _LANE - 1) // _LANE) * _LANE
    if hw_pad != hw:
        x = jnp.pad(x, ((0, 0), (0, 0), (0, hw_pad - hw)))

    w_c1 = weight.reshape(c, 1).astype(jnp.float32)
    b_c1 = bias.reshape(c, 1).astype(jnp.float32)

    # --- generation-aware budgets -------------------------------------------
    # vmem_limit ~ 3/4 of physical (48 MiB v7x, 96 MiB v5e/v6e).  Pass 1 only
    # double-buffers its input (2 big buffers); pass 2 double-buffers input and
    # output (4 big buffers) — so pass-1 x tiles are ~2x larger.
    vmem_cap = _vmem_capacity_bytes()
    vmem_limit = (vmem_cap * 3) // 4
    p1_elems = max(_LANE * 8, (vmem_limit // 3) // itemsize)
    p2_elems = max(_LANE * 8, (vmem_limit // 6) // itemsize)

    # Sublane packing alignment: f32 -> 8, bf16 -> 16, int8/fp8 -> 32.
    c_align = max(8, 32 // itemsize)

    def _specs(target_elems, split_c):
        hwt = _pick_tile(hw_pad, _LANE, max(_LANE, target_elems // c_align))
        ct_cap = max(c_align, target_elems // hwt)
        if split_c and c >= 2 * c_align:
            # Keep >=2 channel blocks so both of v7x's TensorCores get work on
            # the stats pass (its only "parallel" axis is C).  Cheap elsewhere.
            ct_cap = min(ct_cap, c // 2)
        ct = _pick_tile(c, c_align, ct_cap)
        grid = (c // ct, n, hw_pad // hwt)
        x_spec = pl.BlockSpec((None, ct, hwt), lambda ci, ni, hi: (ni, ci, hi))
        cvec_spec = pl.BlockSpec((ct, 1), lambda ci, ni, hi: (ci, 0))
        return grid, x_spec, cvec_spec, ct

    # --- pass 1: per-channel statistics folded into scale/shift --------------
    grid1, x_spec1, cvec_spec1, ct1 = _specs(p1_elems, split_c=True)
    scale, shift = pl.pallas_call(
        functools.partial(_stats_kernel,
                          inv_count=1.0 / float(n * hw), eps=float(eps)),
        out_shape=(jax.ShapeDtypeStruct((c, 1), jnp.float32),
                   jax.ShapeDtypeStruct((c, 1), jnp.float32)),
        grid=grid1,
        in_specs=[x_spec1, cvec_spec1, cvec_spec1],
        out_specs=(cvec_spec1, cvec_spec1),
        scratch_shapes=[pltpu.VMEM((ct1, 1), jnp.float32),
                        pltpu.VMEM((ct1, 1), jnp.float32)],
        compiler_params=pltpu.CompilerParams(
            dimension_semantics=("parallel", "arbitrary", "arbitrary"),
            vmem_limit_bytes=vmem_limit),
    )(x, w_c1, b_c1)

    # --- pass 2: elementwise FMA + leaky_relu, in-place onto x ---------------
    grid2, x_spec2, cvec_spec2, _ = _specs(p2_elems, split_c=False)
    out = pl.pallas_call(
        functools.partial(_apply_kernel, slope=float(slope)),
        out_shape=jax.ShapeDtypeStruct((n, c, hw_pad), x_nchw.dtype),
        grid=grid2,
        in_specs=[x_spec2, cvec_spec2, cvec_spec2],
        out_specs=x_spec2,
        input_output_aliases=({0: 0} if in_place else {}),
        compiler_params=pltpu.CompilerParams(
            dimension_semantics=("parallel", "parallel", "parallel"),
            vmem_limit_bytes=vmem_limit),
    )(x, scale, shift)

    if hw_pad != hw:
        out = out[:, :, :hw]
    return out.reshape(n, c, h, w)


def _reference(x_nchw, weight, bias, eps=1e-5, slope=0.01):
    x = x_nchw.astype(jnp.float32)
    mean = jnp.mean(x, axis=(0, 2, 3), keepdims=True)
    var = jnp.mean(jnp.square(x), axis=(0, 2, 3), keepdims=True) - mean * mean
    y = (x - mean) * jax.lax.rsqrt(var + eps)
    y = y * weight.reshape(1, -1, 1, 1) + bias.reshape(1, -1, 1, 1)
    return jnp.where(y >= 0.0, y, slope * y)


if __name__ == "__main__":
    key = jax.random.PRNGKey(0)
    N, C, H, W = 2, 4, 16, 16

    x = jax.random.normal(key, (N, C, H, W), dtype=jnp.float32)

    # ABN.__init__ / reset_parameters: weight = ones(C), bias = zeros(C)
    weight = jnp.ones((C,), dtype=jnp.float32)
    bias = jnp.zeros((C,), dtype=jnp.float32)

    # Reference first (the kernel call below donates / overwrites x in place).
    ref = np.asarray(_reference(x, weight, bias))

    abn = jax.jit(
        lambda xx, ww, bb: inplace_abn_sync(xx, ww, bb, eps=1e-5, slope=0.01),
        donate_argnums=(0,))
    out = jax.block_until_ready(abn(x, weight, bias))

    np.testing.assert_allclose(np.asarray(out), ref, rtol=1e-5, atol=1e-5)

    print("KERNEL_OK")
</pallas_src>

<mosaic_0001>
module attributes {stable_mosaic.version = 11 : i64} {
  func.func @_apply_kernel(%arg0: i32, %arg1: i32, %arg2: i32, %arg3: memref<1x4x256xf32, #tpu.memory_space<vmem>>, %arg4: memref<4x1xf32, #tpu.memory_space<vmem>>, %arg5: memref<4x1xf32, #tpu.memory_space<vmem>>, %arg6: memref<1x4x256xf32, #tpu.memory_space<vmem>>) attributes {dimension_semantics = [#tpu.dimension_semantics<parallel>, #tpu.dimension_semantics<parallel>, #tpu.dimension_semantics<parallel>], iteration_bounds = array<i64: 1, 2, 1>, scalar_prefetch = 0 : i64, scratch_operands = 0 : i64, tpu.core_type = #tpu.core_type<tc>, window_params = [{transform_indices = @transform_0, window_bounds = array<i64: 1, 4, 256>}, {transform_indices = @transform_1, window_bounds = array<i64: 4, 1>}, {transform_indices = @transform_2, window_bounds = array<i64: 4, 1>}, {transform_indices = @transform_3, window_bounds = array<i64: 1, 4, 256>}]} {
    %c0 = arith.constant 0 : index
    %c0_0 = arith.constant 0 : index
    %c0_1 = arith.constant 0 : index
    %0 = vector.load %arg3[%c0, %c0_0, %c0_1] : memref<1x4x256xf32, #tpu.memory_space<vmem>>, vector<1x4x256xf32>
    %1 = vector.shape_cast %0 : vector<1x4x256xf32> to vector<4x256xf32>
    %c0_2 = arith.constant 0 : index
    %c0_3 = arith.constant 0 : index
    %2 = vector.load %arg4[%c0_2, %c0_3] : memref<4x1xf32, #tpu.memory_space<vmem>>, vector<4x1xf32>
    %3 = vector.broadcast %2 : vector<4x1xf32> to vector<4x256xf32>
    %4 = arith.mulf %1, %3 : vector<4x256xf32>
    %c0_4 = arith.constant 0 : index
    %c0_5 = arith.constant 0 : index
    %5 = vector.load %arg5[%c0_4, %c0_5] : memref<4x1xf32, #tpu.memory_space<vmem>>, vector<4x1xf32>
    %6 = vector.broadcast %5 : vector<4x1xf32> to vector<4x256xf32>
    %7 = arith.addf %4, %6 : vector<4x256xf32>
    %cst = arith.constant 0.00999999977 : f32
    %8 = vector.broadcast %cst : f32 to vector<4x256xf32>
    %9 = arith.mulf %8, %7 : vector<4x256xf32>
    %10 = arith.maximumf %7, %9 : vector<4x256xf32>
    %c0_6 = arith.constant 0 : index
    %c0_7 = arith.constant 0 : index
    %c0_8 = arith.constant 0 : index
    %11 = vector.load %arg6[%c0_6, %c0_7, %c0_8] : memref<1x4x256xf32, #tpu.memory_space<vmem>>, vector<1x4x256xf32>
    %12 = vector.shape_cast %11 : vector<1x4x256xf32> to vector<4x256xf32>
    %13 = vector.shape_cast %10 : vector<4x256xf32> to vector<1x4x256xf32>
    tpu.vector_store %arg6[%c0_6, %c0_7, %c0_8], %13 {strides = array<i32>} : memref<1x4x256xf32, #tpu.memory_space<vmem>>, vector<1x4x256xf32>,
    return
  }
  func.func @transform_0(%arg0: i32, %arg1: i32, %arg2: i32) -> (i32, i32, i32) {
    %c0_i32 = arith.constant 0 : i32
    return %arg1, %arg0, %arg2 : i32, i32, i32
  }
  func.func @transform_1(%arg0: i32, %arg1: i32, %arg2: i32) -> (i32, i32) {
    %c0_i32 = arith.constant 0 : i32
    %c0_i32_0 = arith.constant 0 : i32
    return %arg0, %c0_i32 : i32, i32
  }
  func.func @transform_2(%arg0: i32, %arg1: i32, %arg2: i32) -> (i32, i32) {
    %c0_i32 = arith.constant 0 : i32
    %c0_i32_0 = arith.constant 0 : i32
    return %arg0, %c0_i32 : i32, i32
  }
  func.func @transform_3(%arg0: i32, %arg1: i32, %arg2: i32) -> (i32, i32, i32) {
    %c0_i32 = arith.constant 0 : i32
    return %arg1, %arg0, %arg2 : i32, i32, i32
  }
}

module attributes {stable_mosaic.version = 11 : i64} {
  func.func @_stats_kernel(%arg0: i32, %arg1: i32, %arg2: i32, %arg3: memref<1x4x256xf32, #tpu.memory_space<vmem>>, %arg4: memref<4x1xf32, #tpu.memory_space<vmem>>, %arg5: memref<4x1xf32, #tpu.memory_space<vmem>>, %arg6: memref<4x1xf32, #tpu.memory_space<vmem>>, %arg7: memref<4x1xf32, #tpu.memory_space<vmem>>, %arg8: memref<4x1xf32, #tpu.memory_space<vmem>>, %arg9: memref<4x1xf32, #tpu.memory_space<vmem>>) attributes {dimension_semantics = [#tpu.dimension_semantics<parallel>, #tpu.dimension_semantics<arbitrary>, #tpu.dimension_semantics<arbitrary>], iteration_bounds = array<i64: 1, 2, 1>, scalar_prefetch = 0 : i64, scratch_operands = 2 : i64, tpu.core_type = #tpu.core_type<tc>, window_params = [{transform_indices = @transform_0, window_bounds = array<i64: 1, 4, 256>}, {transform_indices = @transform_1, window_bounds = array<i64: 4, 1>}, {transform_indices = @transform_2, window_bounds = array<i64: 4, 1>}, {transform_indices = @transform_3, window_bounds = array<i64: 4, 1>}, {transform_indices = @transform_4, window_bounds = array<i64: 4, 1>}]} {
    %c0_i32 = arith.constant 0 : i32
    %0 = arith.cmpi eq, %arg1, %c0_i32 : i32
    %c0_i32_0 = arith.constant 0 : i32
    %1 = arith.cmpi eq, %arg2, %c0_i32_0 : i32
    %2 = arith.andi %0, %1 : i1
    %3 = arith.extui %2 : i1 to i32
    %c0_i32_1 = arith.constant 0 : i32
    %4 = arith.cmpi ne, %3, %c0_i32_1 : i32
    scf.if %4 {
      %cst_15 = arith.constant 0.000000e+00 : f32
      %23 = vector.broadcast %cst_15 : f32 to vector<4x1xf32>
      %c0_16 = arith.constant 0 : index
      %c0_17 = arith.constant 0 : index
      %24 = vector.load %arg8[%c0_16, %c0_17] : memref<4x1xf32, #tpu.memory_space<vmem>>, vector<4x1xf32>
      tpu.vector_store %arg8[%c0_16, %c0_17], %23 {strides = array<i32>} : memref<4x1xf32, #tpu.memory_space<vmem>>, vector<4x1xf32>,
      %cst_18 = arith.constant 0.000000e+00 : f32
      %25 = vector.broadcast %cst_18 : f32 to vector<4x1xf32>
      %c0_19 = arith.constant 0 : index
      %c0_20 = arith.constant 0 : index
      %26 = vector.load %arg9[%c0_19, %c0_20] : memref<4x1xf32, #tpu.memory_space<vmem>>, vector<4x1xf32>
      tpu.vector_store %arg9[%c0_19, %c0_20], %25 {strides = array<i32>} : memref<4x1xf32, #tpu.memory_space<vmem>>, vector<4x1xf32>,
    } else {
    }
    %c0 = arith.constant 0 : index
    %c0_2 = arith.constant 0 : index
    %c0_3 = arith.constant 0 : index
    %5 = vector.load %arg3[%c0, %c0_2, %c0_3] : memref<1x4x256xf32, #tpu.memory_space<vmem>>, vector<1x4x256xf32>
    %6 = vector.shape_cast %5 : vector<1x4x256xf32> to vector<4x256xf32>
    %c0_4 = arith.constant 0 : index
    %c0_5 = arith.constant 0 : index
    %7 = vector.load %arg8[%c0_4, %c0_5] : memref<4x1xf32, #tpu.memory_space<vmem>>, vector<4x1xf32>
    %cst = arith.constant dense<0.000000e+00> : vector<4xf32>
    %8 = vector.multi_reduction <add>, %6, %cst [1] : vector<4x256xf32> to vector<4xf32>
    %9 = vector.shape_cast %8 : vector<4xf32> to vector<4x1xf32>
    %10 = arith.addf %7, %9 : vector<4x1xf32>
    %c0_6 = arith.constant 0 : index
    %c0_7 = arith.constant 0 : index
    %11 = vector.load %arg8[%c0_6, %c0_7] : memref<4x1xf32, #tpu.memory_space<vmem>>, vector<4x1xf32>
    tpu.vector_store %arg8[%c0_6, %c0_7], %10 {strides = array<i32>} : memref<4x1xf32, #tpu.memory_space<vmem>>, vector<4x1xf32>,
    %c0_8 = arith.constant 0 : index
    %c0_9 = arith.constant 0 : index
    %12 = vector.load %arg9[%c0_8, %c0_9] : memref<4x1xf32, #tpu.memory_space<vmem>>, vector<4x1xf32>
    %13 = arith.mulf %6, %6 : vector<4x256xf32>
    %cst_10 = arith.constant dense<0.000000e+00> : vector<4xf32>
    %14 = vector.multi_reduction <add>, %13, %cst_10 [1] : vector<4x256xf32> to vector<4xf32>
    %15 = vector.shape_cast %14 : vector<4xf32> to vector<4x1xf32>
    %16 = arith.addf %12, %15 : vector<4x1xf32>
    %c0_11 = arith.constant 0 : index
    %c0_12 = arith.constant 0 : index
    %17 = vector.load %arg9[%c0_11, %c0_12] : memref<4x1xf32, #tpu.memory_space<vmem>>, vector<4x1xf32>
    tpu.vector_store %arg9[%c0_11, %c0_12], %16 {strides = array<i32>} : memref<4x1xf32, #tpu.memory_space<vmem>>, vector<4x1xf32>,
    %c1_i32 = arith.constant 1 : i32
    %18 = arith.cmpi eq, %arg1, %c1_i32 : i32
    %c0_i32_13 = arith.constant 0 : i32
    %19 = arith.cmpi eq, %arg2, %c0_i32_13 : i32
    %20 = arith.andi %18, %19 : i1
    %21 = arith.extui %20 : i1 to i32
    %c0_i32_14 = arith.constant 0 : i32
    %22 = arith.cmpi ne, %21, %c0_i32_14 : i32
    scf.if %22 {
      %c0_15 = arith.constant 0 : index
      %c0_16 = arith.constant 0 : index
      %23 = vector.load %arg8[%c0_15, %c0_16] : memref<4x1xf32, #tpu.memory_space<vmem>>, vector<4x1xf32>
      %cst_17 = arith.constant 0.001953125 : f32
      %24 = vector.broadcast %cst_17 : f32 to vector<4x1xf32>
      %25 = arith.mulf %23, %24 : vector<4x1xf32>
      %c0_18 = arith.constant 0 : index
      %c0_19 = arith.constant 0 : index
      %26 = vector.load %arg9[%c0_18, %c0_19] : memref<4x1xf32, #tpu.memory_space<vmem>>, vector<4x1xf32>
      %cst_20 = arith.constant 0.001953125 : f32
      %27 = vector.broadcast %cst_20 : f32 to vector<4x1xf32>
      %28 = arith.mulf %26, %27 : vector<4x1xf32>
      %29 = arith.mulf %25, %25 : vector<4x1xf32>
      %30 = arith.subf %28, %29 : vector<4x1xf32>
      %cst_21 = arith.constant 0.000000e+00 : f32
      %31 = vector.broadcast %cst_21 : f32 to vector<4x1xf32>
      %32 = arith.maximumf %30, %31 : vector<4x1xf32>
      %cst_22 = arith.constant 9.99999974E-6 : f32
      %33 = vector.broadcast %cst_22 : f32 to vector<4x1xf32>
      %34 = arith.addf %32, %33 : vector<4x1xf32>
      %35 = math.rsqrt %34 : vector<4x1xf32>
      %c0_23 = arith.constant 0 : index
      %c0_24 = arith.constant 0 : index
      %36 = vector.load %arg4[%c0_23, %c0_24] : memref<4x1xf32, #tpu.memory_space<vmem>>, vector<4x1xf32>
      %37 = arith.mulf %36, %35 : vector<4x1xf32>
      %c0_25 = arith.constant 0 : index
      %c0_26 = arith.constant 0 : index
      %38 = vector.load %arg6[%c0_25, %c0_26] : memref<4x1xf32, #tpu.memory_space<vmem>>, vector<4x1xf32>
      tpu.vector_store %arg6[%c0_25, %c0_26], %37 {strides = array<i32>} : memref<4x1xf32, #tpu.memory_space<vmem>>, vector<4x1xf32>,
      %c0_27 = arith.constant 0 : index
      %c0_28 = arith.constant 0 : index
      %39 = vector.load %arg5[%c0_27, %c0_28] : memref<4x1xf32, #tpu.memory_space<vmem>>, vector<4x1xf32>
      %40 = arith.mulf %25, %37 : vector<4x1xf32>
      %41 = arith.subf %39, %40 : vector<4x1xf32>
      %c0_29 = arith.constant 0 : index
      %c0_30 = arith.constant 0 : index
      %42 = vector.load %arg7[%c0_29, %c0_30] : memref<4x1xf32, #tpu.memory_space<vmem>>, vector<4x1xf32>
      tpu.vector_store %arg7[%c0_29, %c0_30], %41 {strides = array<i32>} : memref<4x1xf32, #tpu.memory_space<vmem>>, vector<4x1xf32>,
    } else {
    }
    return
  }
  func.func @transform_0(%arg0: i32, %arg1: i32, %arg2: i32) -> (i32, i32, i32) {
    %c0_i32 = arith.constant 0 : i32
    return %arg1, %arg0, %arg2 : i32, i32, i32
  }
  func.func @transform_1(%arg0: i32, %arg1: i32, %arg2: i32) -> (i32, i32) {
    %c0_i32 = arith.constant 0 : i32
    %c0_i32_0 = arith.constant 0 : i32
    return %arg0, %c0_i32 : i32, i32
  }
  func.func @transform_2(%arg0: i32, %arg1: i32, %arg2: i32) -> (i32, i32) {
    %c0_i32 = arith.constant 0 : i32
    %c0_i32_0 = arith.constant 0 : i32
    return %arg0, %c0_i32 : i32, i32
  }
  func.func @transform_3(%arg0: i32, %arg1: i32, %arg2: i32) -> (i32, i32) {
    %c0_i32 = arith.constant 0 : i32
    %c0_i32_0 = arith.constant 0 : i32
    return %arg0, %c0_i32 : i32, i32
  }
  func.func @transform_4(%arg0: i32, %arg1: i32, %arg2: i32) -> (i32, i32) {
    %c0_i32 = arith.constant 0 : i32
    %c0_i32_0 = arith.constant 0 : i32
    return %arg0, %c0_i32 : i32, i32
  }
}

</mosaic_0001>

<llo_original>
// kernel: _lambda_.2
$region0: #{_lambda_.2}
  #allocation0 [shape = 'u32[]', space=smem, size = 0x4, offset = 0x4, fixed_abs, tag = 'smem constant byte address 0x4 - core index']
  #allocation1 [shape = 'u32[72,128]{1,0:T(1,128)}', space=vmem, size = 0x9000, scoped, tag = 'internal scratch']
  #allocation2 [shape = 'f32[4,1]{1,0:T(4,128)}', space=vmem, size = 0x800, scoped, tag = 'scratch operand']
  #allocation3 [shape = 'f32[4,1]{1,0:T(4,128)}', space=vmem, size = 0x800, scoped, tag = 'scratch operand']
  %s0 = inlined_call_operand.vmem [shape: f32[2,4,256], index: 0, kind: input, shape index: {}]
  %s1 = inlined_call_operand.vmem [shape: f32[4,1], index: 1, kind: input, shape index: {}]
  %s2 = inlined_call_operand.vmem [shape: f32[4,1], index: 2, kind: input, shape index: {}]
  %s3 = inlined_call_operand.vmem [shape: f32[4,1], index: 3, kind: output, shape index: {0}]
  %s4 = inlined_call_operand.vmem [shape: f32[4,1], index: 4, kind: output, shape index: {1}]
  %5 = xla_tuple %s3, %s4
  %s6 = sld [smem:[#allocation0]]
  $region61: #{_lambda_.2} parent=0
    _
  %s8 = ssub.s32 1, %s6
  %s9 = scalar_select 0, %s8, %s6
  loop: start=0, step=1, limit=4
  $region2: #{_lambda_.2} parent=0 // loop_pre_header
    _
  $region3: #{_lambda_.2} parent=0 // loop_header
    %s11 = sphi 0, %s15
    %p12 = scmp.ge.s32.totalorder %s11, 4
    %s18 = sphi 0, %s37
    %s19 = sphi 0, %s33
    %s20 = sphi 0, %s29
    %s21 = sphi 0, %s18
    %s22 = sphi 0, %s19
    %s23 = sphi 0, %s20
    %s24 = sphi 0, %s21
    %s25 = sphi 0, %s22
    %s26 = sphi 0, %s23
    %s44 = sphi 0, %s46
    %s47 = sphi 0, %s44
    %s48 = sphi 0, %s47
    %s64 = sphi 0, %s48
    %s70 = sphi 0, %s72
    %s73 = sphi 0, %s70
    %s74 = sphi 0, %s73
    %s90 = sphi 0, %s74
    %s96 = sphi 0, %s98
    %s99 = sphi 0, %s96
    %s100 = sphi 0, %s99
    %s116 = sphi 0, %s100
    %s122 = sphi 0, %s124
    %s125 = sphi 0, %s122
    %s126 = sphi 0, %s125
    %s142 = sphi 0, %s126
    %s148 = sphi 0, %s150
    %s151 = sphi 0, %s148
    %s152 = sphi 0, %s151
    %s168 = sphi 0, %s152
  $region4: #{_lambda_.2} parent=0 // loop_header_branch
    %14 = sbr.rel (%p12) target = $region8
  $region5: #{_lambda_.2} parent=0 // loop_body
    %s16 = ssub.s32 %s11, 1
    %s17 = ssub.s32 %s11, 2
    %s27 = sadd.s32 1, %s20
    %p28 = scmp.ge.s32.totalorder %s27, 1
    %s29 = scalar_select %p28, 0, %s27
    %s30 = sadd.s32 1, %s19
    %s31 = scalar_select %p28, %s30, %s19
    %p32 = scmp.ge.s32.totalorder %s31, 2
    %s33 = scalar_select %p32, 0, %s31
    %s34 = sadd.s32 1, %s18
    %s35 = scalar_select %p32, %s34, %s18
    %p36 = scmp.ge.s32.totalorder %s35, 1
    %s37 = scalar_select %p36, 0, %s35
    %s38 = ssub.s32 %s19, %s33
    %s39 = ssub.s32 %s18, %s37
    %s40 = sor.u32 %s38, %s39
    %s41 = ssub.s32 %s20, %s29
    %s42 = sor.u32 %s40, %s41
    %p43 = scmp.eq.s32.totalorder %s42, 0
    %s45 = sadd.s32 %s44, 1
    %s46 = scalar_select %p43, %s44, %s45
    %p49 = pneg %p43
    %p50 = scmp.eq.s32.totalorder %s11, 1
    %p51 = por %p49, %p50
    %p52 = scmp.ne.s32.totalorder %s44, %s47
    %p53 = scmp.eq.s32.totalorder %s11, 0
    %p54 = por %p52, %p53
    %p55 = scmp.ne.s32.totalorder %s44, %s47
    %p56 = scmp.eq.s32.totalorder %s16, 1
    %p57 = por %p55, %p56
    %p58 = scmp.ne.s32.totalorder %s47, %s48
    %p59 = scmp.eq.s32.totalorder %s16, 0
    %p60 = por %p58, %p59
    %p61 = scmp.ne.s32.totalorder %s47, %s48
    %p62 = scmp.eq.s32.totalorder %s17, 1
    %p63 = por %p61, %p62
    %p65 = scmp.ne.s32.totalorder %s48, %s64
    %p66 = scmp.eq.s32.totalorder %s17, 0
    %p67 = por %p65, %p66
    %s68 = ssub.s32 %s18, %s37
    %p69 = scmp.eq.s32.totalorder %s68, 0
    %s71 = sadd.s32 %s70, 1
    %s72 = scalar_select %p69, %s70, %s71
    %p75 = pneg %p69
    %p76 = scmp.eq.s32.totalorder %s11, 1
    %p77 = por %p75, %p76
    %p78 = scmp.ne.s32.totalorder %s70, %s73
    %p79 = scmp.eq.s32.totalorder %s11, 0
    %p80 = por %p78, %p79
    %p81 = scmp.ne.s32.totalorder %s70, %s73
    %p82 = scmp.eq.s32.totalorder %s16, 1
    %p83 = por %p81, %p82
    %p84 = scmp.ne.s32.totalorder %s73, %s74
    %p85 = scmp.eq.s32.totalorder %s16, 0
    %p86 = por %p84, %p85
    %p87 = scmp.ne.s32.totalorder %s73, %s74
    %p88 = scmp.eq.s32.totalorder %s17, 1
    %p89 = por %p87, %p88
    %p91 = scmp.ne.s32.totalorder %s74, %s90
    %p92 = scmp.eq.s32.totalorder %s17, 0
    %p93 = por %p91, %p92
    %s94 = ssub.s32 %s18, %s37
    %p95 = scmp.eq.s32.totalorder %s94, 0
    %s97 = sadd.s32 %s96, 1
    %s98 = scalar_select %p95, %s96, %s97
    %p101 = pneg %p95
    %p102 = scmp.eq.s32.totalorder %s11, 1
    %p103 = por %p101, %p102
    %p104 = scmp.ne.s32.totalorder %s96, %s99
    %p105 = scmp.eq.s32.totalorder %s11, 0
    %p106 = por %p104, %p105
    %p107 = scmp.ne.s32.totalorder %s96, %s99
    %p108 = scmp.eq.s32.totalorder %s16, 1
    %p109 = por %p107, %p108
    %p110 = scmp.ne.s32.totalorder %s99, %s100
    %p111 = scmp.eq.s32.totalorder %s16, 0
    %p112 = por %p110, %p111
    %p113 = scmp.ne.s32.totalorder %s99, %s100
    %p114 = scmp.eq.s32.totalorder %s17, 1
    %p115 = por %p113, %p114
    %p117 = scmp.ne.s32.totalorder %s100, %s116
    %p118 = scmp.eq.s32.totalorder %s17, 0
    %p119 = por %p117, %p118
    %s120 = ssub.s32 %s18, %s37
    %p121 = scmp.eq.s32.totalorder %s120, 0
    %s123 = sadd.s32 %s122, 1
    %s124 = scalar_select %p121, %s122, %s123
    %p127 = pneg %p121
    %p128 = scmp.eq.s32.totalorder %s11, 1
    %p129 = por %p127, %p128
    %p130 = scmp.ne.s32.totalorder %s122, %s125
    %p131 = scmp.eq.s32.totalorder %s11, 0
    %p132 = por %p130, %p131
    %p133 = scmp.ne.s32.totalorder %s122, %s125
    %p134 = scmp.eq.s32.totalorder %s16, 1
    %p135 = por %p133, %p134
    %p136 = scmp.ne.s32.totalorder %s125, %s126
    %p137 = scmp.eq.s32.totalorder %s16, 0
    %p138 = por %p136, %p137
    %p139 = scmp.ne.s32.totalorder %s125, %s126
    %p140 = scmp.eq.s32.totalorder %s17, 1
    %p141 = por %p139, %p140
    %p143 = scmp.ne.s32.totalorder %s126, %s142
    %p144 = scmp.eq.s32.totalorder %s17, 0
    %p145 = por %p143, %p144
    %s146 = ssub.s32 %s18, %s37
    %p147 = scmp.eq.s32.totalorder %s146, 0
    %s149 = sadd.s32 %s148, 1
    %s150 = scalar_select %p147, %s148, %s149
    %p153 = pneg %p147
    %p154 = scmp.eq.s32.totalorder %s11, 1
    %p155 = por %p153, %p154
    %p156 = scmp.ne.s32.totalorder %s148, %s151
    %p157 = scmp.eq.s32.totalorder %s11, 0
    %p158 = por %p156, %p157
    %p159 = scmp.ne.s32.totalorder %s148, %s151
    %p160 = scmp.eq.s32.totalorder %s16, 1
    %p161 = por %p159, %p160
    %p162 = scmp.ne.s32.totalorder %s151, %s152
    %p163 = scmp.eq.s32.totalorder %s16, 0
    %p164 = por %p162, %p163
    %p165 = scmp.ne.s32.totalorder %s151, %s152
    %p166 = scmp.eq.s32.totalorder %s17, 1
    %p167 = por %p165, %p166
    %p169 = scmp.ne.s32.totalorder %s152, %s168
    %p170 = scmp.eq.s32.totalorder %s17, 0
    %p171 = por %p169, %p170
    %p172 = scmp.le.s32.totalorder 1, %s11
    %p173 = scmp.lt.s32.totalorder %s11, 3
    %p174 = pnand %p172, %p173
    %p175 = pneg %p174
    // Predicated region
    $region9: #{_lambda_.2} parent=5 // pred_check
      _
    $region10: #{_lambda_.2} parent=5 // pred_check_branch
      %177 = sbr.rel (%p174) target = $region12
    $region11: #{_lambda_.2} parent=5 // pred_region
      %s178 = ssub.s32 %s11, 1
      // Predicated region
      $region13: #{_lambda_.2} parent=11 // pred_check
        %p179 = pneg %p86
      $region14: #{_lambda_.2} parent=11 // pred_check_branch
        %181 = sbr.rel (%p179) target = $region16
      $region15: #{_lambda_.2} parent=11 // pred_region
        %p182 = scmp.lt.s32.totalorder %s21, 0
        %s183 = scalar_select %p182, %s21, 0
        %s184 = smul.addr %s183, 4
        %s185 = scalar_lea.vmem %s1, %s184
      $region16: #{_lambda_.2} parent=11 // pred_fallthru
        _
      // Predicated region
      $region17: #{_lambda_.2} parent=11 // pred_check
        %p186 = pneg %p112
      $region18: #{_lambda_.2} parent=11 // pred_check_branch
        %188 = sbr.rel (%p186) target = $region20
      $region19: #{_lambda_.2} parent=11 // pred_region
        %p189 = scmp.lt.s32.totalorder %s21, 0
        %s190 = scalar_select %p189, %s21, 0
        %s191 = smul.addr %s190, 4
        %s192 = scalar_lea.vmem %s2, %s191
      $region20: #{_lambda_.2} parent=11 // pred_fallthru
        _
    $region12: #{_lambda_.2} parent=5 // pred_fallthru
      _
    %p193 = scmp.lt.s32.totalorder %s11, 2
    // Predicated region
    $region21: #{_lambda_.2} parent=5 // pred_check
      %p194 = pneg %p193
    $region22: #{_lambda_.2} parent=5 // pred_check_branch
      %196 = sbr.rel (%p194) target = $region24
    $region23: #{_lambda_.2} parent=5 // pred_region
      // Predicated region
      $region25: #{_lambda_.2} parent=23 // pred_check
        %p197 = pneg %p54
      $region26: #{_lambda_.2} parent=23 // pred_check_branch
        %199 = sbr.rel (%p197) target = $region28
      $region27: #{_lambda_.2} parent=23 // pred_region
        %s200 = smul.u32 2, %s20
        %p201 = scmp.lt.s32.totalorder %s19, 1
        %s202 = scalar_select %p201, %s19, 1
        %p203 = scmp.lt.s32.totalorder %s18, 0
        %s204 = scalar_select %p203, %s18, 0
        %p205 = scmp.lt.s32.totalorder %s200, 1
        %s206 = scalar_select %p205, %s200, 1
        %s207 = smul.addr %s204, 2
        %s208 = sadd.s32 %s206, %s207
        %s209 = smul.addr %s202, 2
        %s210 = sadd.s32 %s208, %s209
        %s211 = smul.addr %s210, 4
        %s212 = scalar_lea.vmem %s0, %s211
        %s213 = smul.u32 2, %s20
      $region28: #{_lambda_.2} parent=23 // pred_fallthru
        _
    $region24: #{_lambda_.2} parent=5 // pred_fallthru
      _
    %p214 = scmp.le.s32.totalorder 1, %s11
    %p215 = scmp.lt.s32.totalorder %s11, 3
    %p216 = pnand %p214, %p215
    %p217 = pneg %p216
    // Predicated region
    $region29: #{_lambda_.2} parent=5 // pred_check
      _
    $region30: #{_lambda_.2} parent=5 // pred_check_branch
      %219 = sbr.rel (%p216) target = $region32
    $region31: #{_lambda_.2} parent=5 // pred_region
      %s220 = ssub.s32 %s11, 1
      %s221 = smul.u32 2, %s23
      %p222 = scmp.lt.s32.totalorder %s22, 1
      %s223 = scalar_select %p222, %s22, 1
      %p224 = scmp.lt.s32.totalorder %s21, 0
      %s225 = scalar_select %p224, %s21, 0
      %p226 = scmp.lt.s32.totalorder %s221, 1
      %s227 = scalar_select %p226, %s221, 1
      %s228 = smul.addr %s225, 2
      %s229 = sadd.s32 %s227, %s228
      %s230 = smul.addr %s223, 2
      %s231 = sadd.s32 %s229, %s230
      %s232 = smul.addr %s231, 4
      %s233 = scalar_lea.vmem %s0, %s232
      %p234 = pneg %p60
      %p235 = pneg %p57
      %p236 = scmp.lt.s32.totalorder %s21, 0
      %s237 = scalar_select %p236, %s21, 0
      %s238 = smul.addr %s237, 4
      %s239 = scalar_lea.vmem %s1, %s238
      %p240 = pneg %p86
      %p241 = pneg %p83
      %p242 = scmp.lt.s32.totalorder %s21, 0
      %s243 = scalar_select %p242, %s21, 0
      %s244 = smul.addr %s243, 4
      %s245 = scalar_lea.vmem %s2, %s244
      %p246 = pneg %p112
      %p247 = pneg %p109
      %p248 = pneg %p138
      %p249 = pneg %p135
      %p250 = scmp.lt.s32.totalorder %s21, 0
      %s251 = scalar_select %p250, %s21, 0
      %s252 = smul.addr %s251, 4
      %s253 = scalar_lea.vmem %s3, %s252
      %p254 = pneg %p164
      %p255 = pneg %p161
      %p256 = scmp.lt.s32.totalorder %s21, 0
      %s257 = scalar_select %p256, %s21, 0
      %s258 = smul.addr %s257, 4
      %s259 = scalar_lea.vmem %s4, %s258
      %s260 = smul.u32 2, %s23
      %p261 = scmp.lt.s32.totalorder %s22, 1
      %s262 = scalar_select %p261, %s22, 1
      %p263 = scmp.lt.s32.totalorder %s21, 0
      %s264 = scalar_select %p263, %s21, 0
      %p265 = scmp.lt.s32.totalorder %s260, 1
      %s266 = scalar_select %p265, %s260, 1
      %s267 = smul.addr %s264, 2
      %s268 = sadd.s32 %s266, %s267
      %s269 = smul.addr %s262, 2
      %s270 = sadd.s32 %s268, %s269
      %s271 = smul.addr %s270, 4
      %s272 = scalar_lea.vmem %s0, %s271
      %s273 = smul.u32 2, %s23
      %p274 = scmp.lt.s32.totalorder %s21, 0
      %s275 = scalar_select %p274, %s21, 0
      %s276 = smul.addr %s275, 4
      %s277 = scalar_lea.vmem %s1, %s276
      %p278 = scmp.lt.s32.totalorder %s21, 0
      %s279 = scalar_select %p278, %s21, 0
      %s280 = smul.addr %s279, 4
      %s281 = scalar_lea.vmem %s2, %s280
      %p282 = scmp.lt.s32.totalorder %s21, 0
      %s283 = scalar_select %p282, %s21, 0
      %s284 = smul.addr %s283, 4
      %s285 = scalar_lea.vmem %s3, %s284
      %p286 = scmp.lt.s32.totalorder %s21, 0
      %s287 = scalar_select %p286, %s21, 0
      %s288 = smul.addr %s287, 4
      %s289 = scalar_lea.vmem %s4, %s288
      %p290 = scmp.eq.s32.totalorder %s22, 0
      %p291 = scmp.eq.s32.totalorder %s23, 0
      %p292 = pnand %p290, %p291
      %p293 = pneg %p292
      // Predicated region
      $region33: #{_lambda_.2} parent=31 // pred_check
        _
      $region34: #{_lambda_.2} parent=31 // pred_check_branch
        %295 = sbr.rel (%p292) target = $region36
      $region35: #{_lambda_.2} parent=31 // pred_region
        %vm296 = vcmask 3072
        %297 = vst.msk [vmem:[#allocation2] sm:$0xf] %vm296, 0.0
        %298 = vst.msk [vmem:[#allocation3] sm:$0xf] %vm296, 0.0
      $region36: #{_lambda_.2} parent=31 // pred_fallthru
        _
      %v299 = vld [vmem:[%s272] sm:$0xff]
      %v300 = vld [vmem:[#allocation2] sm:$0xf]
      %302 = vst [vmem:[#allocation1] ss:$2 sm:$0xff] %v299
      %v303 = vld.sshfl [vmem:[#allocation1] sm:$0xff pattern:$0x75316420]
      %v304 = vld.sshfl [vmem:[#allocation1 + $0x8] sm:$0xff pattern:$0x75316420]
      %vm307 = vcmask 1043456
      %v308 = vsel %vm307, %v303, 0.0
      %v309 = vsel %vm307, %v304, 0.0
      %v310 = vadd.f32 %v308, %v309
      %311 = vadd.xlane.f32.xlu0 %v310
      %v312 = vpop.xlane.xlu0 %311
      %v313 = vadd.f32 %v300, %v312
      %vm314 = vcmask 3072
      %315 = vst.msk [vmem:[#allocation2] sm:$0xf] %vm314, %v313
      %v316 = vld [vmem:[#allocation3] sm:$0xf]
      %v317 = vmul.f32 %v299, %v299
      %319 = vst [vmem:[#allocation1] ss:$2 sm:$0xff] %v317
      %v320 = vld.sshfl [vmem:[#allocation1] sm:$0xff pattern:$0x75316420]
      %v321 = vld.sshfl [vmem:[#allocation1 + $0x8] sm:$0xff pattern:$0x75316420]
      %v324 = vsel %vm307, %v320, 0.0
      %v325 = vsel %vm307, %v321, 0.0
      %v326 = vadd.f32 %v324, %v325
      %327 = vadd.xlane.f32.xlu0 %v326
      %v328 = vpop.xlane.xlu0 %327
      %v329 = vadd.f32 %v316, %v328
      %330 = vst.msk [vmem:[#allocation3] sm:$0xf] %vm314, %v329
      %p331 = scmp.eq.s32.totalorder %s22, 1
      %p332 = pnand %p331, %p291
      %p333 = pneg %p332
      // Predicated region
      $region37: #{_lambda_.2} parent=31 // pred_check
        _
      $region38: #{_lambda_.2} parent=31 // pred_check_branch
        %335 = sbr.rel (%p332) target = $region40
      $region39: #{_lambda_.2} parent=31 // pred_region
        %v336 = vld [vmem:[#allocation2] sm:$0xf]
        %v337 = vmul.f32 %v336, 0.001953125
        %v338 = vld [vmem:[#allocation3] sm:$0xf]
        %v339 = vmul.f32 %v338, 0.001953125
        %v340 = vmul.f32 %v337, %v337
        %v341 = vsub.f32 %v339, %v340
        %v342 = vmax.f32 %v341, 0.0
        %v343 = vadd.f32 %v342, 1e-05
        %v344 = vrsqrt.pop %v343
        %v345 = vmul.f32 %v344, %v343
        %v346 = vmul.f32 %v345, %v344
        %v347 = vmul.f32 0.5, %v346
        %v348 = vsub.f32 1.5, %v347
        %v349 = vmul.f32 %v344, %v348
        %vm350 = vweird.f32 %v343
        %vm351 = vweird.f32 %v344
        %vm352 = vmor %vm350, %vm351
        %v353 = vsel %vm352, %v344, %v349
        %v354 = vld [vmem:[%s277] sm:$0xf]
        %v355 = vmul.f32 %v354, %v353
        %356 = vst.msk [vmem:[%s285] sm:$0xf] %vm314, %v355
        %v357 = vld [vmem:[%s281] sm:$0xf]
        %v358 = vmul.f32 %v337, %v355
        %v359 = vsub.f32 %v357, %v358
        %360 = vst.msk [vmem:[%s289] sm:$0xf] %vm314, %v359
      $region40: #{_lambda_.2} parent=31 // pred_fallthru
        _
      %p361 = scmp.lt.s32.totalorder %s21, 0
      %s362 = scalar_select %p361, %s21, 0
      %s363 = smul.addr %s362, 4
      %s364 = scalar_lea.vmem %s3, %s363
      %p365 = scmp.lt.s32.totalorder %s21, 0
      %s366 = scalar_select %p365, %s21, 0
      %s367 = smul.addr %s366, 4
      %s368 = scalar_lea.vmem %s4, %s367
      // Predicated region
      $region41: #{_lambda_.2} parent=31 // pred_check
        %p369 = pneg %p135
      $region42: #{_lambda_.2} parent=31 // pred_check_branch
        %371 = sbr.rel (%p369) target = $region44
      $region43: #{_lambda_.2} parent=31 // pred_region
        _
      $region44: #{_lambda_.2} parent=31 // pred_fallthru
        _
      // Predicated region
      $region45: #{_lambda_.2} parent=31 // pred_check
        %p372 = pneg %p161
      $region46: #{_lambda_.2} parent=31 // pred_check_branch
        %374 = sbr.rel (%p372) target = $region48
      $region47: #{_lambda_.2} parent=31 // pred_region
        _
      $region48: #{_lambda_.2} parent=31 // pred_fallthru
        _
      // Predicated region
      $region49: #{_lambda_.2} parent=31 // pred_check
        %p375 = pneg %p135
      $region50: #{_lambda_.2} parent=31 // pred_check_branch
        %377 = sbr.rel (%p375) target = $region52
      $region51: #{_lambda_.2} parent=31 // pred_region
        %p378 = scmp.lt.s32.totalorder %s21, 0
        %s379 = scalar_select %p378, %s21, 0
        %s380 = smul.addr %s379, 4
        %s381 = scalar_lea.vmem %s3, %s380
      $region52: #{_lambda_.2} parent=31 // pred_fallthru
        _
      // Predicated region
      $region53: #{_lambda_.2} parent=31 // pred_check
        %p382 = pneg %p161
      $region54: #{_lambda_.2} parent=31 // pred_check_branch
        %384 = sbr.rel (%p382) target = $region56
      $region55: #{_lambda_.2} parent=31 // pred_region
        %p385 = scmp.lt.s32.totalorder %s21, 0
        %s386 = scalar_select %p385, %s21, 0
        %s387 = smul.addr %s386, 4
        %s388 = scalar_lea.vmem %s4, %s387
      $region56: #{_lambda_.2} parent=31 // pred_fallthru
        _
    $region32: #{_lambda_.2} parent=5 // pred_fallthru
      _
    %p389 = scmp.le.s32.totalorder 2, %s11
    // Predicated region
    $region57: #{_lambda_.2} parent=5 // pred_check
      %p390 = pneg %p389
    $region58: #{_lambda_.2} parent=5 // pred_check_branch
      %392 = sbr.rel (%p390) target = $region60
    $region59: #{_lambda_.2} parent=5 // pred_region
      %s393 = ssub.s32 %s11, 2
    $region60: #{_lambda_.2} parent=5 // pred_fallthru
      _
  $region6: #{_lambda_.2} parent=0 // loop_footer
    %s15 = sadd.s32 1, %s11
  $region7: #{_lambda_.2} parent=0 // loop_footer_branch
    %10 = sbr.rel target = $region3
  $region8: #{_lambda_.2} parent=0 // loop_exit
    _

// kernel: _lambda_.3
$region0: #{_lambda_.3}
  #allocation0 [shape = 'u32[]', space=smem, size = 0x4, offset = 0x4, fixed_abs, tag = 'smem constant byte address 0x4 - core index']
  #allocation1 [shape = 'u32[72,128]{1,0:T(1,128)}', space=vmem, size = 0x9000, scoped, tag = 'internal scratch']
  %s0 = inlined_call_operand.vmem [shape: f32[2,4,256], index: 0, kind: input, shape index: {}, may-alias: {0,3}]
  %s1 = inlined_call_operand.vmem [shape: f32[4,1], index: 1, kind: input, shape index: {}]
  %s2 = inlined_call_operand.vmem [shape: f32[4,1], index: 2, kind: input, shape index: {}]
  %s3 = inlined_call_operand.vmem [shape: f32[2,4,256], index: 3, kind: output, shape index: {}, may-alias: {0,3}]
  %s4 = sld [smem:[#allocation0]]
  $region45: #{_lambda_.3} parent=0
    _
  %s6 = ssub.s32 1, %s4
  %s7 = scalar_select 0, %s6, %s4
  loop: start=0, step=1, limit=4
  $region2: #{_lambda_.3} parent=0 // loop_pre_header
    _
  $region3: #{_lambda_.3} parent=0 // loop_header
    %s9 = sphi 0, %s13
    %p10 = scmp.ge.s32.totalorder %s9, 4
    %s16 = sphi 0, %s35
    %s17 = sphi 0, %s31
    %s18 = sphi 0, %s27
    %s19 = sphi 0, %s16
    %s20 = sphi 0, %s17
    %s21 = sphi 0, %s18
    %s22 = sphi 0, %s19
    %s23 = sphi 0, %s20
    %s24 = sphi 0, %s21
    %s42 = sphi 0, %s44
    %s45 = sphi 0, %s42
    %s46 = sphi 0, %s45
    %s62 = sphi 0, %s46
    %s68 = sphi 0, %s70
    %s71 = sphi 0, %s68
    %s72 = sphi 0, %s71
    %s88 = sphi 0, %s72
    %s94 = sphi 0, %s96
    %s97 = sphi 0, %s94
    %s98 = sphi 0, %s97
    %s114 = sphi 0, %s98
    %s124 = sphi 0, %s126
    %s127 = sphi 0, %s124
    %s128 = sphi 0, %s127
    %s144 = sphi 0, %s128
  $region4: #{_lambda_.3} parent=0 // loop_header_branch
    %12 = sbr.rel (%p10) target = $region8
  $region5: #{_lambda_.3} parent=0 // loop_body
    %s14 = ssub.s32 %s9, 1
    %s15 = ssub.s32 %s9, 2
    %s25 = sadd.s32 1, %s18
    %p26 = scmp.ge.s32.totalorder %s25, 1
    %s27 = scalar_select %p26, 0, %s25
    %s28 = sadd.s32 1, %s17
    %s29 = scalar_select %p26, %s28, %s17
    %p30 = scmp.ge.s32.totalorder %s29, 2
    %s31 = scalar_select %p30, 0, %s29
    %s32 = sadd.s32 1, %s16
    %s33 = scalar_select %p30, %s32, %s16
    %p34 = scmp.ge.s32.totalorder %s33, 1
    %s35 = scalar_select %p34, 0, %s33
    %s36 = ssub.s32 %s17, %s31
    %s37 = ssub.s32 %s16, %s35
    %s38 = sor.u32 %s36, %s37
    %s39 = ssub.s32 %s18, %s27
    %s40 = sor.u32 %s38, %s39
    %p41 = scmp.eq.s32.totalorder %s40, 0
    %s43 = sadd.s32 %s42, 1
    %s44 = scalar_select %p41, %s42, %s43
    %p47 = pneg %p41
    %p48 = scmp.eq.s32.totalorder %s9, 1
    %p49 = por %p47, %p48
    %p50 = scmp.ne.s32.totalorder %s42, %s45
    %p51 = scmp.eq.s32.totalorder %s9, 0
    %p52 = por %p50, %p51
    %p53 = scmp.ne.s32.totalorder %s42, %s45
    %p54 = scmp.eq.s32.totalorder %s14, 1
    %p55 = por %p53, %p54
    %p56 = scmp.ne.s32.totalorder %s45, %s46
    %p57 = scmp.eq.s32.totalorder %s14, 0
    %p58 = por %p56, %p57
    %p59 = scmp.ne.s32.totalorder %s45, %s46
    %p60 = scmp.eq.s32.totalorder %s15, 1
    %p61 = por %p59, %p60
    %p63 = scmp.ne.s32.totalorder %s46, %s62
    %p64 = scmp.eq.s32.totalorder %s15, 0
    %p65 = por %p63, %p64
    %s66 = ssub.s32 %s16, %s35
    %p67 = scmp.eq.s32.totalorder %s66, 0
    %s69 = sadd.s32 %s68, 1
    %s70 = scalar_select %p67, %s68, %s69
    %p73 = pneg %p67
    %p74 = scmp.eq.s32.totalorder %s9, 1
    %p75 = por %p73, %p74
    %p76 = scmp.ne.s32.totalorder %s68, %s71
    %p77 = scmp.eq.s32.totalorder %s9, 0
    %p78 = por %p76, %p77
    %p79 = scmp.ne.s32.totalorder %s68, %s71
    %p80 = scmp.eq.s32.totalorder %s14, 1
    %p81 = por %p79, %p80
    %p82 = scmp.ne.s32.totalorder %s71, %s72
    %p83 = scmp.eq.s32.totalorder %s14, 0
    %p84 = por %p82, %p83
    %p85 = scmp.ne.s32.totalorder %s71, %s72
    %p86 = scmp.eq.s32.totalorder %s15, 1
    %p87 = por %p85, %p86
    %p89 = scmp.ne.s32.totalorder %s72, %s88
    %p90 = scmp.eq.s32.totalorder %s15, 0
    %p91 = por %p89, %p90
    %s92 = ssub.s32 %s16, %s35
    %p93 = scmp.eq.s32.totalorder %s92, 0
    %s95 = sadd.s32 %s94, 1
    %s96 = scalar_select %p93, %s94, %s95
    %p99 = pneg %p93
    %p100 = scmp.eq.s32.totalorder %s9, 1
    %p101 = por %p99, %p100
    %p102 = scmp.ne.s32.totalorder %s94, %s97
    %p103 = scmp.eq.s32.totalorder %s9, 0
    %p104 = por %p102, %p103
    %p105 = scmp.ne.s32.totalorder %s94, %s97
    %p106 = scmp.eq.s32.totalorder %s14, 1
    %p107 = por %p105, %p106
    %p108 = scmp.ne.s32.totalorder %s97, %s98
    %p109 = scmp.eq.s32.totalorder %s14, 0
    %p110 = por %p108, %p109
    %p111 = scmp.ne.s32.totalorder %s97, %s98
    %p112 = scmp.eq.s32.totalorder %s15, 1
    %p113 = por %p111, %p112
    %p115 = scmp.ne.s32.totalorder %s98, %s114
    %p116 = scmp.eq.s32.totalorder %s15, 0
    %p117 = por %p115, %p116
    %s118 = ssub.s32 %s17, %s31
    %s119 = ssub.s32 %s16, %s35
    %s120 = sor.u32 %s118, %s119
    %s121 = ssub.s32 %s18, %s27
    %s122 = sor.u32 %s120, %s121
    %p123 = scmp.eq.s32.totalorder %s122, 0
    %s125 = sadd.s32 %s124, 1
    %s126 = scalar_select %p123, %s124, %s125
    %p129 = pneg %p123
    %p130 = scmp.eq.s32.totalorder %s9, 1
    %p131 = por %p129, %p130
    %p132 = scmp.ne.s32.totalorder %s124, %s127
    %p133 = scmp.eq.s32.totalorder %s9, 0
    %p134 = por %p132, %p133
    %p135 = scmp.ne.s32.totalorder %s124, %s127
    %p136 = scmp.eq.s32.totalorder %s14, 1
    %p137 = por %p135, %p136
    %p138 = scmp.ne.s32.totalorder %s127, %s128
    %p139 = scmp.eq.s32.totalorder %s14, 0
    %p140 = por %p138, %p139
    %p141 = scmp.ne.s32.totalorder %s127, %s128
    %p142 = scmp.eq.s32.totalorder %s15, 1
    %p143 = por %p141, %p142
    %p145 = scmp.ne.s32.totalorder %s128, %s144
    %p146 = scmp.eq.s32.totalorder %s15, 0
    %p147 = por %p145, %p146
    %p148 = scmp.le.s32.totalorder 1, %s9
    %p149 = scmp.lt.s32.totalorder %s9, 3
    %p150 = pnand %p148, %p149
    %p151 = pneg %p150
    // Predicated region
    $region9: #{_lambda_.3} parent=5 // pred_check
      _
    $region10: #{_lambda_.3} parent=5 // pred_check_branch
      %153 = sbr.rel (%p150) target = $region12
    $region11: #{_lambda_.3} parent=5 // pred_region
      %s154 = ssub.s32 %s9, 1
      // Predicated region
      $region13: #{_lambda_.3} parent=11 // pred_check
        %p155 = pneg %p84
      $region14: #{_lambda_.3} parent=11 // pred_check_branch
        %157 = sbr.rel (%p155) target = $region16
      $region15: #{_lambda_.3} parent=11 // pred_region
        %p158 = scmp.lt.s32.totalorder %s19, 0
        %s159 = scalar_select %p158, %s19, 0
        %s160 = smul.addr %s159, 4
        %s161 = scalar_lea.vmem %s1, %s160
      $region16: #{_lambda_.3} parent=11 // pred_fallthru
        _
      // Predicated region
      $region17: #{_lambda_.3} parent=11 // pred_check
        %p162 = pneg %p110
      $region18: #{_lambda_.3} parent=11 // pred_check_branch
        %164 = sbr.rel (%p162) target = $region20
      $region19: #{_lambda_.3} parent=11 // pred_region
        %p165 = scmp.lt.s32.totalorder %s19, 0
        %s166 = scalar_select %p165, %s19, 0
        %s167 = smul.addr %s166, 4
        %s168 = scalar_lea.vmem %s2, %s167
      $region20: #{_lambda_.3} parent=11 // pred_fallthru
        _
    $region12: #{_lambda_.3} parent=5 // pred_fallthru
      _
    %p169 = scmp.lt.s32.totalorder %s9, 2
    // Predicated region
    $region21: #{_lambda_.3} parent=5 // pred_check
      %p170 = pneg %p169
    $region22: #{_lambda_.3} parent=5 // pred_check_branch
      %172 = sbr.rel (%p170) target = $region24
    $region23: #{_lambda_.3} parent=5 // pred_region
      // Predicated region
      $region25: #{_lambda_.3} parent=23 // pred_check
        %p173 = pneg %p52
      $region26: #{_lambda_.3} parent=23 // pred_check_branch
        %175 = sbr.rel (%p173) target = $region28
      $region27: #{_lambda_.3} parent=23 // pred_region
        %s176 = smul.u32 2, %s18
        %p177 = scmp.lt.s32.totalorder %s17, 1
        %s178 = scalar_select %p177, %s17, 1
        %p179 = scmp.lt.s32.totalorder %s16, 0
        %s180 = scalar_select %p179, %s16, 0
        %p181 = scmp.lt.s32.totalorder %s176, 1
        %s182 = scalar_select %p181, %s176, 1
        %s183 = smul.addr %s180, 2
        %s184 = sadd.s32 %s182, %s183
        %s185 = smul.addr %s178, 2
        %s186 = sadd.s32 %s184, %s185
        %s187 = smul.addr %s186, 4
        %s188 = scalar_lea.vmem %s0, %s187
        %s189 = smul.u32 2, %s18
      $region28: #{_lambda_.3} parent=23 // pred_fallthru
        _
    $region24: #{_lambda_.3} parent=5 // pred_fallthru
      _
    %p190 = scmp.le.s32.totalorder 1, %s9
    %p191 = scmp.lt.s32.totalorder %s9, 3
    %p192 = pnand %p190, %p191
    %p193 = pneg %p192
    // Predicated region
    $region29: #{_lambda_.3} parent=5 // pred_check
      _
    $region30: #{_lambda_.3} parent=5 // pred_check_branch
      %195 = sbr.rel (%p192) target = $region32
    $region31: #{_lambda_.3} parent=5 // pred_region
      %s196 = ssub.s32 %s9, 1
      %s197 = smul.u32 2, %s21
      %p198 = scmp.lt.s32.totalorder %s20, 1
      %s199 = scalar_select %p198, %s20, 1
      %p200 = scmp.lt.s32.totalorder %s19, 0
      %s201 = scalar_select %p200, %s19, 0
      %p202 = scmp.lt.s32.totalorder %s197, 1
      %s203 = scalar_select %p202, %s197, 1
      %s204 = smul.addr %s201, 2
      %s205 = sadd.s32 %s203, %s204
      %s206 = smul.addr %s199, 2
      %s207 = sadd.s32 %s205, %s206
      %s208 = smul.addr %s207, 4
      %s209 = scalar_lea.vmem %s0, %s208
      %p210 = pneg %p58
      %p211 = pneg %p55
      %p212 = scmp.lt.s32.totalorder %s19, 0
      %s213 = scalar_select %p212, %s19, 0
      %s214 = smul.addr %s213, 4
      %s215 = scalar_lea.vmem %s1, %s214
      %p216 = pneg %p84
      %p217 = pneg %p81
      %p218 = scmp.lt.s32.totalorder %s19, 0
      %s219 = scalar_select %p218, %s19, 0
      %s220 = smul.addr %s219, 4
      %s221 = scalar_lea.vmem %s2, %s220
      %p222 = pneg %p110
      %p223 = pneg %p107
      %p224 = pneg %p140
      %p225 = pneg %p137
      %s226 = smul.u32 2, %s21
      %p227 = scmp.lt.s32.totalorder %s20, 1
      %s228 = scalar_select %p227, %s20, 1
      %p229 = scmp.lt.s32.totalorder %s19, 0
      %s230 = scalar_select %p229, %s19, 0
      %p231 = scmp.lt.s32.totalorder %s226, 1
      %s232 = scalar_select %p231, %s226, 1
      %s233 = smul.addr %s230, 2
      %s234 = sadd.s32 %s232, %s233
      %s235 = smul.addr %s228, 2
      %s236 = sadd.s32 %s234, %s235
      %s237 = smul.addr %s236, 4
      %s238 = scalar_lea.vmem %s3, %s237
      %s239 = smul.u32 2, %s21
      %p240 = scmp.lt.s32.totalorder %s20, 1
      %s241 = scalar_select %p240, %s20, 1
      %p242 = scmp.lt.s32.totalorder %s19, 0
      %s243 = scalar_select %p242, %s19, 0
      %p244 = scmp.lt.s32.totalorder %s239, 1
      %s245 = scalar_select %p244, %s239, 1
      %s246 = smul.addr %s243, 2
      %s247 = sadd.s32 %s245, %s246
      %s248 = smul.addr %s241, 2
      %s249 = sadd.s32 %s247, %s248
      %s250 = smul.addr %s249, 4
      %s251 = scalar_lea.vmem %s0, %s250
      %s252 = smul.u32 2, %s21
      %p253 = scmp.lt.s32.totalorder %s19, 0
      %s254 = scalar_select %p253, %s19, 0
      %s255 = smul.addr %s254, 4
      %s256 = scalar_lea.vmem %s1, %s255
      %p257 = scmp.lt.s32.totalorder %s19, 0
      %s258 = scalar_select %p257, %s19, 0
      %s259 = smul.addr %s258, 4
      %s260 = scalar_lea.vmem %s2, %s259
      %s261 = smul.u32 2, %s21
      %p262 = scmp.lt.s32.totalorder %s20, 1
      %s263 = scalar_select %p262, %s20, 1
      %p264 = scmp.lt.s32.totalorder %s19, 0
      %s265 = scalar_select %p264, %s19, 0
      %p266 = scmp.lt.s32.totalorder %s261, 1
      %s267 = scalar_select %p266, %s261, 1
      %s268 = smul.addr %s265, 2
      %s269 = sadd.s32 %s267, %s268
      %s270 = smul.addr %s263, 2
      %s271 = sadd.s32 %s269, %s270
      %s272 = smul.addr %s271, 4
      %s273 = scalar_lea.vmem %s3, %s272
      %s274 = smul.u32 2, %s21
      %v275 = vld [vmem:[%s251] sm:$0xff]
      %v276 = vld [vmem:[%s256] sm:$0xf]
      %278 = vset.pattern.permute.xlu0 0
      %279 = vperm.xlu0 %278, %v276
      %v280 = vpop.permute.xlu0 %279
      %v282 = vunpack.c.l.s4 839922192
      %v283 = vunpack.c.0.s8 %v282
      %v284 = vperm.slane %v280, %v283
      %v286 = vmul.f32 %v275, %v284
      %v287 = vld [vmem:[%s260] sm:$0xf]
      %289 = vset.pattern.permute.xlu0 0
      %290 = vperm.xlu0 %289, %v287
      %v291 = vpop.permute.xlu0 %290
      %v293 = vunpack.c.l.s4 839922192
      %v294 = vunpack.c.0.s8 %v293
      %v295 = vperm.slane %v291, %v294
      %v297 = vadd.f32 %v286, %v295
      %v298 = vmul.f32 %v297, 0.01
      %v299 = vmax.f32 %v297, %v298
      %300 = vst [vmem:[%s273] sm:$0xff] %v299
      %s301 = smul.u32 2, %s21
      %p302 = scmp.lt.s32.totalorder %s20, 1
      %s303 = scalar_select %p302, %s20, 1
      %p304 = scmp.lt.s32.totalorder %s19, 0
      %s305 = scalar_select %p304, %s19, 0
      %p306 = scmp.lt.s32.totalorder %s301, 1
      %s307 = scalar_select %p306, %s301, 1
      %s308 = smul.addr %s305, 2
      %s309 = sadd.s32 %s307, %s308
      %s310 = smul.addr %s303, 2
      %s311 = sadd.s32 %s309, %s310
      %s312 = smul.addr %s311, 4
      %s313 = scalar_lea.vmem %s3, %s312
      // Predicated region
      $region33: #{_lambda_.3} parent=31 // pred_check
        %p314 = pneg %p137
      $region34: #{_lambda_.3} parent=31 // pred_check_branch
        %316 = sbr.rel (%p314) target = $region36
      $region35: #{_lambda_.3} parent=31 // pred_region
        %s317 = smul.u32 2, %s21
      $region36: #{_lambda_.3} parent=31 // pred_fallthru
        _
    $region32: #{_lambda_.3} parent=5 // pred_fallthru
      _
    %p318 = scmp.le.s32.totalorder 2, %s9
    // Predicated region
    $region37: #{_lambda_.3} parent=5 // pred_check
      %p319 = pneg %p318
    $region38: #{_lambda_.3} parent=5 // pred_check_branch
      %321 = sbr.rel (%p319) target = $region40
    $region39: #{_lambda_.3} parent=5 // pred_region
      %s322 = ssub.s32 %s9, 2
      // Predicated region
      $region41: #{_lambda_.3} parent=39 // pred_check
        %p323 = pneg %p143
      $region42: #{_lambda_.3} parent=39 // pred_check_branch
        %325 = sbr.rel (%p323) target = $region44
      $region43: #{_lambda_.3} parent=39 // pred_region
        %s326 = smul.u32 2, %s24
        %p327 = scmp.lt.s32.totalorder %s23, 1
        %s328 = scalar_select %p327, %s23, 1
        %p329 = scmp.lt.s32.totalorder %s22, 0
        %s330 = scalar_select %p329, %s22, 0
        %p331 = scmp.lt.s32.totalorder %s326, 1
        %s332 = scalar_select %p331, %s326, 1
        %s333 = smul.addr %s330, 2
        %s334 = sadd.s32 %s332, %s333
        %s335 = smul.addr %s328, 2
        %s336 = sadd.s32 %s334, %s335
        %s337 = smul.addr %s336, 4
        %s338 = scalar_lea.vmem %s3, %s337
      $region44: #{_lambda_.3} parent=39 // pred_fallthru
        _
    $region40: #{_lambda_.3} parent=5 // pred_fallthru
      _
  $region6: #{_lambda_.3} parent=0 // loop_footer
    %s13 = sadd.s32 1, %s9
  $region7: #{_lambda_.3} parent=0 // loop_footer_branch
    %8 = sbr.rel target = $region3
  $region8: #{_lambda_.3} parent=0 // loop_exit
    _

</llo_original>
